<compile_context>
chip_gen: v6e
topology: v6e:2x2x1
jax: 0.10.0
libtpu: 0.0.40
codegen_flags: <defaults>
</compile_context>

<pallas_src>
import functools

import jax
import jax.numpy as jnp
from jax.experimental import pallas as pl
from jax.experimental.pallas import tpu as pltpu

_TARGET_W = 1024           # target OUTPUT lane width per grid step (512-2048)
_VMEM_BUDGET = 40 << 20    # per-step VMEM budget (safe on v7x's 64 MiB VMEM)
_VMEM_LIMIT = 48 << 20     # scoped-vmem limit handed to Mosaic


def _round_up(v, m):
    return (v + m - 1) // m * m


def _make_fused_kernel(n_layers, K, dil, pad, compute_dtype):
    """Build the fused Conv1dNet kernel body (all sizes are Python ints).

    refs = [x, mask, (w, b) * n_layers, out].
    """
    # TODO(synk): for wide-channel configs (C_pad >= 64 with W >= 512),
    # ping-pong two VMEM scratch buffers and chunk the lane axis with
    # lax.fori_loop to bound vreg live ranges (spill avoidance).

    def kernel(*refs):
        x_ref, m_ref = refs[0], refs[1]
        o_ref = refs[-1]

        a = x_ref[...]                                  # (C0_pad, W0)
        for l in range(n_layers):
            w_ref = refs[2 + 2 * l]                     # (Cout_pad, K*Cin_pad)
            b_ref = refs[3 + 2 * l]                     # (Cout_pad, 1)  f32
            w_in = a.shape[-1]
            w_out = w_in - 2 * pad                      # buffer shrinks/layer

            # im2col slab: K statically shifted slices stacked on sublanes.
            parts = [a[:, k * dil:k * dil + w_out] for k in range(K)]
            slab = parts[0] if K == 1 else jnp.concatenate(parts, axis=0)

            # One MXU matmul (f32 accumulation) + bias + ReLU (f32 VPU math).
            y = jnp.dot(w_ref[...], slab, preferred_element_type=jnp.float32)
            y = jnp.maximum(y + b_ref[...], 0.0)
            # Dropout omitted: identity in eval mode.

            if l == n_layers - 1:
                # Halo / junk lanes are sliced away by the wrapper, so the
                # final layer skips the mask (saves a full-width select).
                o_ref[...] = y.astype(o_ref.dtype)
            else:
                # Re-zero padding halos / junk lanes (== per-layer zero
                # padding): ONE multiply against the precomputed absolute-lane
                # mask, sliced at a static per-layer offset.  Buffer index j
                # of layer l's output maps to absolute lane pad*(l+1) + j.
                off = pad * (l + 1)
                a = (y * m_ref[:, off:off + w_out]).astype(compute_dtype)

    return kernel


@functools.partial(
    jax.jit,
    static_argnames=("kernel_size", "dilation_size", "compute_dtype"))
def conv1dnet_forward(x, params, kernel_size=3, dilation_size=1,
                      compute_dtype=jnp.bfloat16):
    """x: (N, C_in, L) -> (N, C_out_last, L).  Conv1d stride=1, eval mode."""
    K, dil = kernel_size, dilation_size
    if ((K - 1) * dil) % 2 != 0:
        # padding = (K-1)*dil//2 would not give same-length output.
        raise ValueError("Conv1dNet Pallas kernel requires (kernel_size - 1) *"
                         " dilation to be even (same-length output).")
    pad = ((K - 1) * dil) // 2

    N, C_in, L = x.shape
    n_layers = len(params)
    act_bytes = jnp.dtype(compute_dtype).itemsize
    out_bytes = jnp.dtype(x.dtype).itemsize

    # Channel padding to the sublane-packing multiple (8 for f32, 16 for
    # bf16); padded channels have zero weights/bias so they stay exactly zero.
    sub = max(8, 32 // act_bytes)
    c_pads = [_round_up(C_in, sub)]
    for w, _ in params:
        c_pads.append(_round_up(w.shape[0], sub))
    C_last = params[-1][0].shape[0]
    C_last_pad = c_pads[-1]

    # Pack NB batch elements along lanes (zero-padded segments of length Lp).
    # Output lane width is a multiple of 128; the input buffer carries
    # 2*pad*n_layers extra lanes so every layer's shifted slice is in-bounds.
    Lp = L + 2 * pad
    M = pad * (n_layers - 1)                  # global left margin

    def geom(nb):
        w_last = _round_up(nb * Lp, 128)      # lane-dense output width
        return w_last, w_last + 2 * pad * n_layers

    def vmem_per_step(nb):
        w_last, w0 = geom(nb)
        v = 2 * c_pads[0] * w0 * act_bytes            # double-buffered input
        v += 2 * C_last_pad * w_last * out_bytes      # double-buffered output
        v += 2 * w0 * 4                               # validity mask
        work = 0
        for i in range(n_layers):
            ci, co = c_pads[i], c_pads[i + 1]
            v += 2 * (co * K * ci * act_bytes + co * 4)   # weights + bias
            wi = w0 - 2 * pad * i
            wo = wi - 2 * pad
            live = (ci * wi + K * ci * wo + co * wo) * act_bytes + co * wo * 4
            work = max(work, live)
        return v + 2 * work                            # headroom

    # NB selection: ~_TARGET_W output lanes per step, >= 2 grid tiles when
    # N >= 2 (v7x has 2 TensorCores), and under the per-step VMEM budget.
    NB = min(N, max(1, _TARGET_W // Lp))
    if N >= 2:
        NB = min(NB, -(-N // 2))
    while NB > 1 and vmem_per_step(NB) > _VMEM_BUDGET:
        NB = max(1, NB // 2)
    n_tiles = -(-N // NB)
    N_pad = n_tiles * NB
    W_last, W0 = geom(NB)

    # --- pack activations: (n_tiles, C0_pad, W0), batch folded into lanes ---
    if NB == 1:
        # No lane-packing transposes needed: a single pad does everything.
        left = M + pad
        xp = jnp.pad(x, ((0, N_pad - N), (0, c_pads[0] - C_in),
                         (left, W0 - left - L)))
    else:
        xp = jnp.pad(x, ((0, N_pad - N), (0, c_pads[0] - C_in), (pad, pad)))
        xp = xp.reshape(n_tiles, NB, c_pads[0], Lp)
        xp = jnp.transpose(xp, (0, 2, 1, 3)).reshape(n_tiles, c_pads[0],
                                                     NB * Lp)
        xp = jnp.pad(xp, ((0, 0), (0, 0), (M, W0 - M - NB * Lp)))
    xp = xp.astype(compute_dtype)

    # --- precomputed absolute-lane validity mask (one for the whole stack) --
    # Segment m is valid on absolute lanes [M + m*Lp + pad, M + m*Lp + pad + L).
    rel = jnp.arange(W0, dtype=jnp.int32) - (M + pad)
    valid = (rel >= 0) & (rel < NB * Lp) & ((rel % Lp) < L)
    mask = valid.astype(jnp.float32).reshape(1, W0)

    # --- im2col / lane-friendly weight layout: (Cout_pad, K*Cin_pad) --------
    flat_args = [xp, mask]
    in_specs = [
        pl.BlockSpec((pl.Squeezed(), c_pads[0], W0), lambda t: (t, 0, 0)),
        pl.BlockSpec((1, W0), lambda t: (0, 0)),
    ]
    flops = 0
    for i, (w, b) in enumerate(params):
        C_out, C_in_i, Kw = w.shape
        assert Kw == K and _round_up(C_in_i, sub) == c_pads[i]
        ci_p, co_p = c_pads[i], c_pads[i + 1]
        w_p = jnp.pad(w, ((0, co_p - C_out), (0, ci_p - C_in_i), (0, 0)))
        w2d = jnp.transpose(w_p, (0, 2, 1)).reshape(co_p, K * ci_p)
        b2 = jnp.pad(b, (0, co_p - C_out)).reshape(co_p, 1).astype(jnp.float32)
        flat_args += [w2d.astype(compute_dtype), b2]
        in_specs += [pl.BlockSpec((co_p, K * ci_p), lambda t: (0, 0)),
                     pl.BlockSpec((co_p, 1), lambda t: (0, 0))]
        flops += 2 * co_p * K * ci_p * (W0 - 2 * pad * (i + 1)) * n_tiles

    bytes_accessed = sum(int(a.size) * a.dtype.itemsize for a in flat_args)
    bytes_accessed += n_tiles * C_last_pad * W_last * out_bytes

    kernel = _make_fused_kernel(n_layers, K, dil, pad, compute_dtype)

    out = pl.pallas_call(
        kernel,
        out_shape=jax.ShapeDtypeStruct((n_tiles, C_last_pad, W_last), x.dtype),
        grid_spec=pltpu.PrefetchScalarGridSpec(
            num_scalar_prefetch=0,
            grid=(n_tiles,),
            in_specs=in_specs,
            out_specs=pl.BlockSpec((pl.Squeezed(), C_last_pad, W_last),
                                   lambda t: (t, 0, 0)),
        ),
        compiler_params=pltpu.CompilerParams(
            dimension_semantics=("parallel",),
            vmem_limit_bytes=_VMEM_LIMIT),
        cost_estimate=pl.CostEstimate(flops=int(flops), transcendentals=0,
                                      bytes_accessed=int(bytes_accessed)),
    )(*flat_args)

    # --- unpack: final buffer index j = m*Lp + jj for packed batch elem m ---
    if NB == 1:
        y = out[:, :, :L]
    else:
        y = out[:, :, :NB * Lp].reshape(n_tiles, C_last_pad, NB, Lp)[..., :L]
        y = jnp.transpose(y, (0, 2, 1, 3)).reshape(N_pad, C_last_pad, L)
    return y[:N, :C_last, :]


def make_conv1dnet_params(key, num_inputs, num_channels, kernel_size=3):
    """Deterministic parameters mirroring Con1dBlock.__init__.

    weight_norm: w = g * v / ||v||, norm over (C_in, K) per output channel,
    with v ~ N(0, 0.01) (matches init_weights' normal_(0, 0.01)).
    """
    params = []
    in_ch = num_inputs
    for out_ch in num_channels:
        key, kv, kg, kb = jax.random.split(key, 4)
        v = 0.01 * jax.random.normal(kv, (out_ch, in_ch, kernel_size),
                                     dtype=jnp.float32)
        g = 1.0 + 0.1 * jax.random.normal(kg, (out_ch,), dtype=jnp.float32)
        norm = jnp.sqrt(jnp.sum(v * v, axis=(1, 2), keepdims=True)) + 1e-12
        w = g.reshape(out_ch, 1, 1) * v / norm
        bound = 1.0 / jnp.sqrt(jnp.float32(in_ch * kernel_size))
        b = jax.random.uniform(kb, (out_ch,), dtype=jnp.float32,
                               minval=-bound, maxval=bound)
        params.append((w, b))
        in_ch = out_ch
    return params


def conv1dnet_reference(x, params, kernel_size=3, dilation_size=1):
    """Pure-JAX reference (lax.conv) for correctness checking."""
    padding = int((kernel_size - 1) * dilation_size / 2)
    out = x
    for w, b in params:
        y = jax.lax.conv_general_dilated(
            out, w, window_strides=(1,), padding=[(padding, padding)],
            rhs_dilation=(dilation_size,),
            dimension_numbers=("NCH", "OIH", "NCH"))
        out = jnp.maximum(y + b.reshape(1, -1, 1), 0.0)
    return out


if __name__ == "__main__":
    key = jax.random.PRNGKey(0)
    kx, kp = jax.random.split(key)

    kernel_size = 3
    batch, num_inputs, length = 2, 4, 16
    x = jax.random.normal(kx, (batch, num_inputs, length), dtype=jnp.float32)

    # Config 1: 2 layers, dilation=1.  f32 path checked tight; bf16 (default
    # storage dtype) checked loose against the f32 lax.conv reference.
    num_channels = (8, 8)
    params = make_conv1dnet_params(kp, num_inputs, num_channels, kernel_size)
    ref = conv1dnet_reference(x, params, kernel_size=kernel_size)
    out_f32 = jax.block_until_ready(
        conv1dnet_forward(x, params, kernel_size=kernel_size,
                          compute_dtype=jnp.float32))
    assert out_f32.shape == (batch, num_channels[-1], length)
    assert jnp.allclose(out_f32, ref, atol=1e-5, rtol=1e-5)
    out_bf16 = jax.block_until_ready(
        conv1dnet_forward(x, params, kernel_size=kernel_size))
    assert out_bf16.shape == (batch, num_channels[-1], length)
    assert jnp.allclose(out_bf16, ref, atol=5e-2, rtol=5e-2)

    # Config 2: 3 layers, mixed widths, dilation=2 (fused margins + dilation).
    num_channels2 = (8, 16, 8)
    params2 = make_conv1dnet_params(kp, num_inputs, num_channels2, kernel_size)
    ref2 = conv1dnet_reference(x, params2, kernel_size=kernel_size,
                               dilation_size=2)
    out2 = jax.block_until_ready(
        conv1dnet_forward(x, params2, kernel_size=kernel_size,
                          dilation_size=2, compute_dtype=jnp.float32))
    assert out2.shape == (batch, num_channels2[-1], length)
    assert jnp.allclose(out2, ref2, atol=1e-5, rtol=1e-5)

    # Config 3: larger batch so several batch elements pack into one wide
    # lane block (NB > 1) while the grid still has >= 2 parallel tiles.
    batch3 = 8
    x3 = jax.random.normal(jax.random.PRNGKey(1),
                           (batch3, num_inputs, length), dtype=jnp.float32)
    ref3 = conv1dnet_reference(x3, params, kernel_size=kernel_size)
    out3 = jax.block_until_ready(
        conv1dnet_forward(x3, params, kernel_size=kernel_size,
                          compute_dtype=jnp.float32))
    assert out3.shape == (batch3, num_channels[-1], length)
    assert jnp.allclose(out3, ref3, atol=1e-5, rtol=1e-5)
    out3_bf16 = jax.block_until_ready(
        conv1dnet_forward(x3, params, kernel_size=kernel_size))
    assert jnp.allclose(out3_bf16, ref3, atol=5e-2, rtol=5e-2)

    print("KERNEL_OK")
</pallas_src>

<mosaic_0001>
module attributes {stable_mosaic.version = 11 : i64} {
  func.func @kernel(%arg0: i32, %arg1: memref<1x8x132xf32, #tpu.memory_space<vmem>>, %arg2: memref<1x132xf32, #tpu.memory_space<vmem>>, %arg3: memref<8x24xf32, #tpu.memory_space<vmem>>, %arg4: memref<8x1xf32, #tpu.memory_space<vmem>>, %arg5: memref<8x24xf32, #tpu.memory_space<vmem>>, %arg6: memref<8x1xf32, #tpu.memory_space<vmem>>, %arg7: memref<1x8x128xf32, #tpu.memory_space<vmem>>) attributes {dimension_semantics = [#tpu.dimension_semantics<parallel>], iteration_bounds = array<i64: 2>, scalar_prefetch = 0 : i64, scratch_operands = 0 : i64, tpu.core_type = #tpu.core_type<tc>, window_params = [{transform_indices = @transform_0, window_bounds = array<i64: 1, 8, 132>}, {pipeline_mode = #tpu.pipeline_mode<synchronous>, transform_indices = @transform_1, window_bounds = array<i64: 1, 132>}, {pipeline_mode = #tpu.pipeline_mode<synchronous>, transform_indices = @transform_2, window_bounds = array<i64: 8, 24>}, {pipeline_mode = #tpu.pipeline_mode<synchronous>, transform_indices = @transform_3, window_bounds = array<i64: 8, 1>}, {pipeline_mode = #tpu.pipeline_mode<synchronous>, transform_indices = @transform_4, window_bounds = array<i64: 8, 24>}, {pipeline_mode = #tpu.pipeline_mode<synchronous>, transform_indices = @transform_5, window_bounds = array<i64: 8, 1>}, {transform_indices = @transform_6, window_bounds = array<i64: 1, 8, 128>}]} {
    %c0 = arith.constant 0 : index
    %c0_0 = arith.constant 0 : index
    %c0_1 = arith.constant 0 : index
    %0 = vector.load %arg1[%c0, %c0_0, %c0_1] : memref<1x8x132xf32, #tpu.memory_space<vmem>>, vector<1x8x132xf32>
    %1 = vector.shape_cast %0 : vector<1x8x132xf32> to vector<8x132xf32>
    %2 = vector.extract_strided_slice %1 {offsets = [0, 0], sizes = [8, 130], strides = [1, 1]} : vector<8x132xf32> to vector<8x130xf32>
    %3 = vector.extract_strided_slice %1 {offsets = [0, 1], sizes = [8, 130], strides = [1, 1]} : vector<8x132xf32> to vector<8x130xf32>
    %4 = vector.extract_strided_slice %1 {offsets = [0, 2], sizes = [8, 130], strides = [1, 1]} : vector<8x132xf32> to vector<8x130xf32>
    %5 = tpu.concatenate %2, %3, %4 in 0 : vector<8x130xf32>, vector<8x130xf32>, vector<8x130xf32> -> vector<24x130xf32>
    %c0_2 = arith.constant 0 : index
    %c0_3 = arith.constant 0 : index
    %6 = vector.load %arg3[%c0_2, %c0_3] : memref<8x24xf32, #tpu.memory_space<vmem>>, vector<8x24xf32>
    %cst = arith.constant dense<0.000000e+00> : vector<8x130xf32>
    %7 = tpu.matmul %6, %5, %cst {dimension_numbers = #tpu.dot_dimension_numbers<[1], [0], [0], [1], [0, 0, 1, 1], [], []>} : vector<8x24xf32>, vector<24x130xf32>, vector<8x130xf32> -> vector<8x130xf32>
    %c0_4 = arith.constant 0 : index
    %c0_5 = arith.constant 0 : index
    %8 = vector.load %arg4[%c0_4, %c0_5] : memref<8x1xf32, #tpu.memory_space<vmem>>, vector<8x1xf32>
    %9 = vector.broadcast %8 : vector<8x1xf32> to vector<8x130xf32>
    %10 = arith.addf %7, %9 : vector<8x130xf32>
    %cst_6 = arith.constant 0.000000e+00 : f32
    %11 = vector.broadcast %cst_6 : f32 to vector<8x130xf32>
    %12 = arith.maximumf %10, %11 : vector<8x130xf32>
    %c0_7 = arith.constant 0 : index
    %c1 = arith.constant 1 : index
    %13 = vector.load %arg2[%c0_7, %c1] : memref<1x132xf32, #tpu.memory_space<vmem>>, vector<1x130xf32>
    %14 = vector.broadcast %13 : vector<1x130xf32> to vector<8x130xf32>
    %15 = arith.mulf %12, %14 : vector<8x130xf32>
    %16 = vector.extract_strided_slice %15 {offsets = [0, 0], sizes = [8, 128], strides = [1, 1]} : vector<8x130xf32> to vector<8x128xf32>
    %17 = vector.extract_strided_slice %15 {offsets = [0, 1], sizes = [8, 128], strides = [1, 1]} : vector<8x130xf32> to vector<8x128xf32>
    %18 = vector.extract_strided_slice %15 {offsets = [0, 2], sizes = [8, 128], strides = [1, 1]} : vector<8x130xf32> to vector<8x128xf32>
    %19 = tpu.concatenate %16, %17, %18 in 0 : vector<8x128xf32>, vector<8x128xf32>, vector<8x128xf32> -> vector<24x128xf32>
    %c0_8 = arith.constant 0 : index
    %c0_9 = arith.constant 0 : index
    %20 = vector.load %arg5[%c0_8, %c0_9] : memref<8x24xf32, #tpu.memory_space<vmem>>, vector<8x24xf32>
    %cst_10 = arith.constant dense<0.000000e+00> : vector<8x128xf32>
    %21 = tpu.matmul %20, %19, %cst_10 {dimension_numbers = #tpu.dot_dimension_numbers<[1], [0], [0], [1], [0, 0, 1, 1], [], []>} : vector<8x24xf32>, vector<24x128xf32>, vector<8x128xf32> -> vector<8x128xf32>
    %c0_11 = arith.constant 0 : index
    %c0_12 = arith.constant 0 : index
    %22 = vector.load %arg6[%c0_11, %c0_12] : memref<8x1xf32, #tpu.memory_space<vmem>>, vector<8x1xf32>
    %23 = vector.broadcast %22 : vector<8x1xf32> to vector<8x128xf32>
    %24 = arith.addf %21, %23 : vector<8x128xf32>
    %cst_13 = arith.constant 0.000000e+00 : f32
    %25 = vector.broadcast %cst_13 : f32 to vector<8x128xf32>
    %26 = arith.maximumf %24, %25 : vector<8x128xf32>
    %c0_14 = arith.constant 0 : index
    %c0_15 = arith.constant 0 : index
    %c0_16 = arith.constant 0 : index
    %27 = vector.load %arg7[%c0_14, %c0_15, %c0_16] : memref<1x8x128xf32, #tpu.memory_space<vmem>>, vector<1x8x128xf32>
    %28 = vector.shape_cast %27 : vector<1x8x128xf32> to vector<8x128xf32>
    %29 = vector.shape_cast %26 : vector<8x128xf32> to vector<1x8x128xf32>
    tpu.vector_store %arg7[%c0_14, %c0_15, %c0_16], %29 {strides = array<i32>} : memref<1x8x128xf32, #tpu.memory_space<vmem>>, vector<1x8x128xf32>,
    return
  }
  func.func @transform_0(%arg0: i32) -> (i32, i32, i32) {
    %c0_i32 = arith.constant 0 : i32
    %c0_i32_0 = arith.constant 0 : i32
    %c0_i32_1 = arith.constant 0 : i32
    return %arg0, %c0_i32, %c0_i32_0 : i32, i32, i32
  }
  func.func @transform_1(%arg0: i32) -> (i32, i32) {
    %c0_i32 = arith.constant 0 : i32
    %c0_i32_0 = arith.constant 0 : i32
    %c0_i32_1 = arith.constant 0 : i32
    return %c0_i32, %c0_i32_0 : i32, i32
  }
  func.func @transform_2(%arg0: i32) -> (i32, i32) {
    %c0_i32 = arith.constant 0 : i32
    %c0_i32_0 = arith.constant 0 : i32
    %c0_i32_1 = arith.constant 0 : i32
    return %c0_i32, %c0_i32_0 : i32, i32
  }
  func.func @transform_3(%arg0: i32) -> (i32, i32) {
    %c0_i32 = arith.constant 0 : i32
    %c0_i32_0 = arith.constant 0 : i32
    %c0_i32_1 = arith.constant 0 : i32
    return %c0_i32, %c0_i32_0 : i32, i32
  }
  func.func @transform_4(%arg0: i32) -> (i32, i32) {
    %c0_i32 = arith.constant 0 : i32
    %c0_i32_0 = arith.constant 0 : i32
    %c0_i32_1 = arith.constant 0 : i32
    return %c0_i32, %c0_i32_0 : i32, i32
  }
  func.func @transform_5(%arg0: i32) -> (i32, i32) {
    %c0_i32 = arith.constant 0 : i32
    %c0_i32_0 = arith.constant 0 : i32
    %c0_i32_1 = arith.constant 0 : i32
    return %c0_i32, %c0_i32_0 : i32, i32
  }
  func.func @transform_6(%arg0: i32) -> (i32, i32, i32) {
    %c0_i32 = arith.constant 0 : i32
    %c0_i32_0 = arith.constant 0 : i32
    %c0_i32_1 = arith.constant 0 : i32
    return %arg0, %c0_i32, %c0_i32_0 : i32, i32, i32
  }
}

</mosaic_0001>

<llo_original>
// kernel: conv1dnet_forward.1
$region0: #{conv1dnet_forward.1}
  #allocation0 [shape = 'u32[]', space=smem, size = 0x4, offset = 0x4, fixed_abs, tag = 'smem constant byte address 0x4 - core index']
  #allocation1 [shape = 'u32[144,128]{1,0:T(1,128)}', space=vmem, size = 0x12000, scoped, tag = 'internal scratch']
  %s0 = inlined_call_operand.vmem [shape: f32[2,8,132], index: 0, kind: input, shape index: {}]
  %s1 = inlined_call_operand.vmem [shape: f32[1,132], index: 1, kind: input, shape index: {}]
  %s2 = inlined_call_operand.vmem [shape: f32[8,24], index: 2, kind: input, shape index: {}]
  %s3 = inlined_call_operand.vmem [shape: f32[8,1], index: 3, kind: input, shape index: {}]
  %s4 = inlined_call_operand.vmem [shape: f32[8,24], index: 4, kind: input, shape index: {}]
  %s5 = inlined_call_operand.vmem [shape: f32[8,1], index: 5, kind: input, shape index: {}]
  %s6 = inlined_call_operand.hbm [shape: f32[2,8,128], index: 6, kind: output, shape index: {}]
  %s7 = sld [smem:[#allocation0]]
  $region57: #{conv1dnet_forward.1} parent=0
    _
  %s9 = ssub.s32 1, %s7
  %s10 = scalar_select 0, %s9, %s7
  $region1: #{conv1dnet_forward.1} parent=0
    #allocation2 [shape = 'u8[8192]{0}', space=vmem, size = 0x2000, scoped, tag = 'output window, operand 0']
    #allocation3 [shape = 's32[2]{0}', space=sflag, size = 0x8, scoped, tag = 'scoped memory for conv1dnet_forward.1']
    %11 = vsyncpa [#allocation3], 0
    %s12 = scalar_lea.sflag [#allocation3], 1
    %13 = vsyncpa %s12, 0
    loop: start=0, step=1, limit=4
    $region2: #{conv1dnet_forward.1} parent=1 // loop_pre_header
      _
    $region3: #{conv1dnet_forward.1} parent=1 // loop_header
      %s15 = sphi 0, %s19
      %p16 = scmp.ge.s32.totalorder %s15, 4
      %s25 = sphi 0, %s27
      %s28 = sphi 0, %s25
      %s29 = sphi 0, %s28
      %s45 = sphi 0, %s29
      %s49 = sphi 0, %s49
      %s51 = sphi 0, %s49
      %s52 = sphi 0, %s51
      %s66 = sphi 0, %s52
      %s70 = sphi 0, %s70
      %s72 = sphi 0, %s70
      %s73 = sphi 0, %s72
      %s87 = sphi 0, %s73
      %s91 = sphi 0, %s91
      %s93 = sphi 0, %s91
      %s94 = sphi 0, %s93
      %s108 = sphi 0, %s94
      %s112 = sphi 0, %s112
      %s114 = sphi 0, %s112
      %s115 = sphi 0, %s114
      %s129 = sphi 0, %s115
      %s133 = sphi 0, %s133
      %s135 = sphi 0, %s133
      %s136 = sphi 0, %s135
      %s150 = sphi 0, %s136
      %s156 = sphi 0, %s158
      %s159 = sphi 0, %s156
      %s160 = sphi 0, %s159
      %s176 = sphi 0, %s160
    $region4: #{conv1dnet_forward.1} parent=1 // loop_header_branch
      %18 = sbr.rel (%p16) target = $region8
    $region5: #{conv1dnet_forward.1} parent=1 // loop_body
      %s20 = ssub.s32 %s15, 1
      %s21 = ssub.s32 %s15, 2
      %s22 = sadd.s32 %s15, 1
      %s23 = ssub.s32 %s15, %s22
      %p24 = scmp.eq.s32.totalorder %s23, 0
      %s26 = sadd.s32 %s25, 1
      %s27 = scalar_select %p24, %s25, %s26
      %p30 = pneg %p24
      %p31 = scmp.eq.s32.totalorder %s15, 1
      %p32 = por %p30, %p31
      %p33 = scmp.ne.s32.totalorder %s25, %s28
      %p34 = scmp.eq.s32.totalorder %s15, 0
      %p35 = por %p33, %p34
      %p36 = scmp.ne.s32.totalorder %s25, %s28
      %p37 = scmp.eq.s32.totalorder %s20, 1
      %p38 = por %p36, %p37
      %p39 = scmp.ne.s32.totalorder %s28, %s29
      %p40 = scmp.eq.s32.totalorder %s20, 0
      %p41 = por %p39, %p40
      %p42 = scmp.ne.s32.totalorder %s28, %s29
      %p43 = scmp.eq.s32.totalorder %s21, 1
      %p44 = por %p42, %p43
      %p46 = scmp.ne.s32.totalorder %s29, %s45
      %p47 = scmp.eq.s32.totalorder %s21, 0
      %p48 = por %p46, %p47
      %s50 = sadd.s32 %s49, 1
      %p53 = scmp.eq.s32.totalorder %s15, 1
      %p54 = scmp.ne.s32.totalorder %s49, %s51
      %p55 = scmp.eq.s32.totalorder %s15, 0
      %p56 = por %p54, %p55
      %p57 = scmp.ne.s32.totalorder %s49, %s51
      %p58 = scmp.eq.s32.totalorder %s20, 1
      %p59 = por %p57, %p58
      %p60 = scmp.ne.s32.totalorder %s51, %s52
      %p61 = scmp.eq.s32.totalorder %s20, 0
      %p62 = por %p60, %p61
      %p63 = scmp.ne.s32.totalorder %s51, %s52
      %p64 = scmp.eq.s32.totalorder %s21, 1
      %p65 = por %p63, %p64
      %p67 = scmp.ne.s32.totalorder %s52, %s66
      %p68 = scmp.eq.s32.totalorder %s21, 0
      %p69 = por %p67, %p68
      %s71 = sadd.s32 %s70, 1
      %p74 = scmp.eq.s32.totalorder %s15, 1
      %p75 = scmp.ne.s32.totalorder %s70, %s72
      %p76 = scmp.eq.s32.totalorder %s15, 0
      %p77 = por %p75, %p76
      %p78 = scmp.ne.s32.totalorder %s70, %s72
      %p79 = scmp.eq.s32.totalorder %s20, 1
      %p80 = por %p78, %p79
      %p81 = scmp.ne.s32.totalorder %s72, %s73
      %p82 = scmp.eq.s32.totalorder %s20, 0
      %p83 = por %p81, %p82
      %p84 = scmp.ne.s32.totalorder %s72, %s73
      %p85 = scmp.eq.s32.totalorder %s21, 1
      %p86 = por %p84, %p85
      %p88 = scmp.ne.s32.totalorder %s73, %s87
      %p89 = scmp.eq.s32.totalorder %s21, 0
      %p90 = por %p88, %p89
      %s92 = sadd.s32 %s91, 1
      %p95 = scmp.eq.s32.totalorder %s15, 1
      %p96 = scmp.ne.s32.totalorder %s91, %s93
      %p97 = scmp.eq.s32.totalorder %s15, 0
      %p98 = por %p96, %p97
      %p99 = scmp.ne.s32.totalorder %s91, %s93
      %p100 = scmp.eq.s32.totalorder %s20, 1
      %p101 = por %p99, %p100
      %p102 = scmp.ne.s32.totalorder %s93, %s94
      %p103 = scmp.eq.s32.totalorder %s20, 0
      %p104 = por %p102, %p103
      %p105 = scmp.ne.s32.totalorder %s93, %s94
      %p106 = scmp.eq.s32.totalorder %s21, 1
      %p107 = por %p105, %p106
      %p109 = scmp.ne.s32.totalorder %s94, %s108
      %p110 = scmp.eq.s32.totalorder %s21, 0
      %p111 = por %p109, %p110
      %s113 = sadd.s32 %s112, 1
      %p116 = scmp.eq.s32.totalorder %s15, 1
      %p117 = scmp.ne.s32.totalorder %s112, %s114
      %p118 = scmp.eq.s32.totalorder %s15, 0
      %p119 = por %p117, %p118
      %p120 = scmp.ne.s32.totalorder %s112, %s114
      %p121 = scmp.eq.s32.totalorder %s20, 1
      %p122 = por %p120, %p121
      %p123 = scmp.ne.s32.totalorder %s114, %s115
      %p124 = scmp.eq.s32.totalorder %s20, 0
      %p125 = por %p123, %p124
      %p126 = scmp.ne.s32.totalorder %s114, %s115
      %p127 = scmp.eq.s32.totalorder %s21, 1
      %p128 = por %p126, %p127
      %p130 = scmp.ne.s32.totalorder %s115, %s129
      %p131 = scmp.eq.s32.totalorder %s21, 0
      %p132 = por %p130, %p131
      %s134 = sadd.s32 %s133, 1
      %p137 = scmp.eq.s32.totalorder %s15, 1
      %p138 = scmp.ne.s32.totalorder %s133, %s135
      %p139 = scmp.eq.s32.totalorder %s15, 0
      %p140 = por %p138, %p139
      %p141 = scmp.ne.s32.totalorder %s133, %s135
      %p142 = scmp.eq.s32.totalorder %s20, 1
      %p143 = por %p141, %p142
      %p144 = scmp.ne.s32.totalorder %s135, %s136
      %p145 = scmp.eq.s32.totalorder %s20, 0
      %p146 = por %p144, %p145
      %p147 = scmp.ne.s32.totalorder %s135, %s136
      %p148 = scmp.eq.s32.totalorder %s21, 1
      %p149 = por %p147, %p148
      %p151 = scmp.ne.s32.totalorder %s136, %s150
      %p152 = scmp.eq.s32.totalorder %s21, 0
      %p153 = por %p151, %p152
      %s154 = ssub.s32 %s15, %s22
      %p155 = scmp.eq.s32.totalorder %s154, 0
      %s157 = sadd.s32 %s156, 1
      %s158 = scalar_select %p155, %s156, %s157
      %p161 = pneg %p155
      %p162 = scmp.eq.s32.totalorder %s15, 1
      %p163 = por %p161, %p162
      %p164 = scmp.ne.s32.totalorder %s156, %s159
      %p165 = scmp.eq.s32.totalorder %s15, 0
      %p166 = por %p164, %p165
      %p167 = scmp.ne.s32.totalorder %s156, %s159
      %p168 = scmp.eq.s32.totalorder %s20, 1
      %p169 = por %p167, %p168
      %p170 = scmp.ne.s32.totalorder %s159, %s160
      %p171 = scmp.eq.s32.totalorder %s20, 0
      %p172 = por %p170, %p171
      %p173 = scmp.ne.s32.totalorder %s159, %s160
      %p174 = scmp.eq.s32.totalorder %s21, 1
      %p175 = por %p173, %p174
      %p177 = scmp.ne.s32.totalorder %s160, %s176
      %p178 = scmp.eq.s32.totalorder %s21, 0
      %p179 = por %p177, %p178
      %p180 = scmp.le.s32.totalorder 1, %s15
      %p181 = scmp.lt.s32.totalorder %s15, 3
      %p182 = pnand %p180, %p181
      %p183 = pneg %p182
      // Predicated region
      $region9: #{conv1dnet_forward.1} parent=5 // pred_check
        _
      $region10: #{conv1dnet_forward.1} parent=5 // pred_check_branch
        %185 = sbr.rel (%p182) target = $region12
      $region11: #{conv1dnet_forward.1} parent=5 // pred_region
        %s186 = ssub.s32 %s15, 1
        // Predicated region
        $region13: #{conv1dnet_forward.1} parent=11 // pred_check
          %p187 = pneg %p62
        $region14: #{conv1dnet_forward.1} parent=11 // pred_check_branch
          %189 = sbr.rel (%p187) target = $region16
        $region15: #{conv1dnet_forward.1} parent=11 // pred_region
          _
        $region16: #{conv1dnet_forward.1} parent=11 // pred_fallthru
          _
        // Predicated region
        $region17: #{conv1dnet_forward.1} parent=11 // pred_check
          %p190 = pneg %p83
        $region18: #{conv1dnet_forward.1} parent=11 // pred_check_branch
          %192 = sbr.rel (%p190) target = $region20
        $region19: #{conv1dnet_forward.1} parent=11 // pred_region
          _
        $region20: #{conv1dnet_forward.1} parent=11 // pred_fallthru
          _
        // Predicated region
        $region21: #{conv1dnet_forward.1} parent=11 // pred_check
          %p193 = pneg %p104
        $region22: #{conv1dnet_forward.1} parent=11 // pred_check_branch
          %195 = sbr.rel (%p193) target = $region24
        $region23: #{conv1dnet_forward.1} parent=11 // pred_region
          _
        $region24: #{conv1dnet_forward.1} parent=11 // pred_fallthru
          _
        // Predicated region
        $region25: #{conv1dnet_forward.1} parent=11 // pred_check
          %p196 = pneg %p125
        $region26: #{conv1dnet_forward.1} parent=11 // pred_check_branch
          %198 = sbr.rel (%p196) target = $region28
        $region27: #{conv1dnet_forward.1} parent=11 // pred_region
          _
        $region28: #{conv1dnet_forward.1} parent=11 // pred_fallthru
          _
        // Predicated region
        $region29: #{conv1dnet_forward.1} parent=11 // pred_check
          %p199 = pneg %p146
        $region30: #{conv1dnet_forward.1} parent=11 // pred_check_branch
          %201 = sbr.rel (%p199) target = $region32
        $region31: #{conv1dnet_forward.1} parent=11 // pred_region
          _
        $region32: #{conv1dnet_forward.1} parent=11 // pred_fallthru
          _
      $region12: #{conv1dnet_forward.1} parent=5 // pred_fallthru
        _
      %p202 = scmp.lt.s32.totalorder %s15, 2
      // Predicated region
      $region33: #{conv1dnet_forward.1} parent=5 // pred_check
        %p203 = pneg %p202
      $region34: #{conv1dnet_forward.1} parent=5 // pred_check_branch
        %205 = sbr.rel (%p203) target = $region36
      $region35: #{conv1dnet_forward.1} parent=5 // pred_region
        // Predicated region
        $region37: #{conv1dnet_forward.1} parent=35 // pred_check
          %p206 = pneg %p35
        $region38: #{conv1dnet_forward.1} parent=35 // pred_check_branch
          %208 = sbr.rel (%p206) target = $region40
        $region39: #{conv1dnet_forward.1} parent=35 // pred_region
          %p209 = scmp.lt.s32.totalorder %s15, 1
          %s210 = scalar_select %p209, %s15, 1
          %s211 = smul.addr %s210, 2
          %s212 = smul.addr %s211, 8
          %s213 = scalar_lea.vmem %s0, %s212
        $region40: #{conv1dnet_forward.1} parent=35 // pred_fallthru
          _
      $region36: #{conv1dnet_forward.1} parent=5 // pred_fallthru
        _
      %p214 = scmp.le.s32.totalorder 1, %s15
      %p215 = scmp.lt.s32.totalorder %s15, 3
      %p216 = pnand %p214, %p215
      %p217 = pneg %p216
      // Predicated region
      $region41: #{conv1dnet_forward.1} parent=5 // pred_check
        _
      $region42: #{conv1dnet_forward.1} parent=5 // pred_check_branch
        %219 = sbr.rel (%p216) target = $region44
      $region43: #{conv1dnet_forward.1} parent=5 // pred_region
        %s220 = ssub.s32 %s15, 1
        %p221 = scmp.lt.s32.totalorder %s20, 1
        %s222 = scalar_select %p221, %s20, 1
        %s223 = smul.addr %s222, 2
        %s224 = smul.addr %s223, 8
        %s225 = scalar_lea.vmem %s0, %s224
        %p226 = pneg %p41
        %p227 = pneg %p38
        %p228 = pneg %p62
        %p229 = pneg %p59
        %p230 = pneg %p83
        %p231 = pneg %p80
        %p232 = pneg %p104
        %p233 = pneg %p101
        %p234 = pneg %p125
        %p235 = pneg %p122
        %p236 = pneg %p146
        %p237 = pneg %p143
        %p238 = pneg %p172
        %p239 = pneg %p169
        %s240 = sand.u32 %s159, 1
        %s241 = scalar_lea.sflag [#allocation3], %s240
        %s242 = sand.u32 %s159, 1
        %s243 = smul.addr %s242, 8
        %s244 = scalar_lea.vmem [#allocation2], %s243
        %p245 = scmp.lt.s32.totalorder %s20, 1
        %s246 = scalar_select %p245, %s20, 1
        %s247 = smul.addr %s246, 2
        %s248 = smul.addr %s247, 8
        %s249 = scalar_lea.vmem %s0, %s248
        %v250 = vld [vmem:[%s249] sm:$0xff]
        %v251 = vld [vmem:[%s249 + $0x8] sm:$0xff]
        %254 = vrot.lane.b32.xlu0 %v250, 127
        %v255 = vpop.permute.xlu0 %254
        %256 = vrot.lane.b32.xlu0 %v251, 127
        %v257 = vpop.permute.xlu0 %256
        %vm258 = vcmask 1039360
        %v259 = vsel %vm258, %v255, %v257
        %262 = vrot.lane.b32.xlu0 %v250, 126
        %v263 = vpop.permute.xlu0 %262
        %264 = vrot.lane.b32.xlu0 %v251, 126
        %v265 = vpop.permute.xlu0 %264
        %vm266 = vcmask 1031168
        %v267 = vsel %vm266, %v263, %v265
        %v270 = vld [vmem:[%s2] sm:$0xff]
        %v271 = vld [vmem:[%s3] sm:$0xff]
        %273 = vset.pattern.permute.xlu0 0
        %274 = vperm.xlu0 %273, %v271
        %v275 = vpop.permute.xlu0 %274
        %vm277 = vcmask 195584
        %v279 = vsel %vm277, %v270, 0
        %281 = vmatprep.subr.mxu0 0.0
        %282 = vmatpush1.msra.mxu0 0.0
        %283 = vmatprep.subr.mxu0 0.0
        %284 = vmatpush1.msra.mxu0 0.0
        %285 = vmatprep.subr.mxu0 0.0
        %286 = vmatpush1.msra.mxu0 0.0
        %287 = vmatprep.subr.mxu0 0.0
        %288 = vmatpush1.msra.mxu0 0.0
        %289 = vmatprep.subr.mxu0 0.0
        %290 = vmatpush1.msra.mxu0 0.0
        %291 = vmatprep.subr.mxu0 0.0
        %292 = vmatpush1.msra.mxu0 0.0
        %293 = vmatprep.subr.mxu0 0.0
        %294 = vmatpush1.msra.mxu0 0.0
        %295 = vmatprep.subr.mxu0 0.0
        %296 = vmatpush1.msra.mxu0 0.0
        %297 = vmatprep.subr.mxu0 0.0
        %298 = vmatpush1.msra.mxu0 0.0
        %299 = vmatprep.subr.mxu0 0.0
        %300 = vmatpush1.msra.mxu0 0.0
        %301 = vmatprep.subr.mxu0 0.0
        %302 = vmatpush1.msra.mxu0 0.0
        %303 = vmatprep.subr.mxu0 0.0
        %304 = vmatpush1.msra.mxu0 0.0
        %305 = vmatprep.subr.mxu0 0.0
        %306 = vmatpush1.msra.mxu0 0.0
        %307 = vmatprep.subr.mxu0 %v265
        %308 = vmatpush1.msra.mxu0 %v267
        %309 = vmatprep.subr.mxu0 %v257
        %310 = vmatpush1.msra.mxu0 %v259
        %311 = vmatprep.subr.mxu0 %v251
        %312 = vmatpush1.msra.mxu0 %v250
        %313 = vmatprep.subr.mxu0 0.0
        %314 = vmatpush2.msra.mxu0 0.0
        %315 = vmatprep.subr.mxu0 0.0
        %316 = vmatpush2.msra.mxu0 0.0
        %317 = vmatprep.subr.mxu0 0.0
        %318 = vmatpush2.msra.mxu0 0.0
        %319 = vmatprep.subr.mxu0 0.0
        %320 = vmatpush2.msra.mxu0 0.0
        %321 = vmatprep.subr.mxu0 0.0
        %322 = vmatpush2.msra.mxu0 0.0
        %323 = vmatprep.subr.mxu0 0.0
        %324 = vmatpush2.msra.mxu0 0.0
        %325 = vmatprep.subr.mxu0 0.0
        %326 = vmatpush2.msra.mxu0 0.0
        %327 = vmatprep.subr.mxu0 0.0
        %328 = vmatpush2.msra.mxu0 0.0
        %329 = vmatprep.subr.mxu0 0.0
        %330 = vmatpush2.msra.mxu0 0.0
        %331 = vmatprep.subr.mxu0 0.0
        %332 = vmatpush2.msra.mxu0 0.0
        %333 = vmatprep.subr.mxu0 0.0
        %334 = vmatpush2.msra.mxu0 0.0
        %335 = vmatprep.subr.mxu0 0.0
        %336 = vmatpush2.msra.mxu0 0.0
        %337 = vmatprep.subr.mxu0 0.0
        %338 = vmatpush2.msra.mxu0 0.0
        %339 = vmatprep.subr.mxu0 0.0
        %340 = vmatpush2.msra.mxu0 0.0
        %341 = vmatprep.subr.mxu0 0.0
        %342 = vmatpush2.msra.mxu0 0.0
        %343 = vmatprep.subr.mxu0 0.0
        %344 = vmatpush2.msra.mxu0 0.0
        %345 = vmatprep.mubr.f32.mxu0 0.0
        %346 = vmatmul.mubr.f32.gmra.mxu0 %v279
        %v347 = vpop.f32.mrf.mxu0
        %v348 = vadd.f32 %v275, %v347
        %v349 = vpop.f32.mrf.mxu0
        %v350 = vadd.f32 %v275, %v349
        %351 = vdwg.mxu0
        %v352 = vmax.f32 %v348, 0.0
        %v353 = vmax.f32 %v350, 0.0
        %v354 = vld [vmem:[%s1] sm:$0x3]
        %v356 = vlaneseq
        %v357 = vshrl.u32 %v356, 7
        %v358 = vsub.s32 0, %v357
        %v359 = vrot.slane %v354, %v358
        %v360 = vlaneseq
        %v361 = vshrl.u32 %v360, 7
        %v362 = vsub.s32 1, %v361
        %v363 = vrot.slane %v354, %v362
        %364 = vrot.lane.b32.xlu0 %v359, 127
        %v365 = vpop.permute.xlu0 %364
        %366 = vrot.lane.b32.xlu0 %v363, 127
        %v367 = vpop.permute.xlu0 %366
        %v368 = vsel %vm258, %v365, %v367
        %v371 = vmul.f32 %v352, %v368
        %v372 = vmul.f32 %v353, %v367
        %375 = vrot.lane.b32.xlu0 %v371, 127
        %v376 = vpop.permute.xlu0 %375
        %377 = vrot.lane.b32.xlu0 %v372, 127
        %v378 = vpop.permute.xlu0 %377
        %v379 = vsel %vm258, %v376, %v378
        %381 = vrot.lane.b32.xlu0 %v371, 126
        %v382 = vpop.permute.xlu0 %381
        %383 = vrot.lane.b32.xlu0 %v372, 126
        %v384 = vpop.permute.xlu0 %383
        %v385 = vsel %vm266, %v382, %v384
        %v387 = vld [vmem:[%s4] sm:$0xff]
        %v388 = vld [vmem:[%s5] sm:$0xff]
        %390 = vset.pattern.permute.xlu0 0
        %391 = vperm.xlu0 %390, %v388
        %v392 = vpop.permute.xlu0 %391
        %v395 = vsel %vm277, %v387, 0
        %397 = vmatprep.subr.mxu0 0.0
        %398 = vmatpush1.msra.mxu0 0.0
        %399 = vmatprep.subr.mxu0 0.0
        %400 = vmatpush1.msra.mxu0 0.0
        %401 = vmatprep.subr.mxu0 0.0
        %402 = vmatpush1.msra.mxu0 0.0
        %403 = vmatprep.subr.mxu0 0.0
        %404 = vmatpush1.msra.mxu0 0.0
        %405 = vmatprep.subr.mxu0 0.0
        %406 = vmatpush1.msra.mxu0 0.0
        %407 = vmatprep.subr.mxu0 0.0
        %408 = vmatpush1.msra.mxu0 0.0
        %409 = vmatprep.subr.mxu0 0.0
        %410 = vmatpush1.msra.mxu0 0.0
        %411 = vmatprep.subr.mxu0 0.0
        %412 = vmatpush1.msra.mxu0 0.0
        %413 = vmatprep.subr.mxu0 0.0
        %414 = vmatpush1.msra.mxu0 0.0
        %415 = vmatprep.subr.mxu0 0.0
        %416 = vmatpush1.msra.mxu0 0.0
        %417 = vmatprep.subr.mxu0 0.0
        %418 = vmatpush1.msra.mxu0 0.0
        %419 = vmatprep.subr.mxu0 0.0
        %420 = vmatpush1.msra.mxu0 0.0
        %421 = vmatprep.subr.mxu0 0.0
        %422 = vmatpush1.msra.mxu0 0.0
        %423 = vmatprep.subr.mxu0 0.0
        %424 = vmatpush1.msra.mxu0 %v385
        %425 = vmatprep.subr.mxu0 0.0
        %426 = vmatpush1.msra.mxu0 %v379
        %427 = vmatprep.subr.mxu0 0.0
        %428 = vmatpush1.msra.mxu0 %v371
        %429 = vmatprep.subr.mxu0 0.0
        %430 = vmatpush2.msra.mxu0 0.0
        %431 = vmatprep.subr.mxu0 0.0
        %432 = vmatpush2.msra.mxu0 0.0
        %433 = vmatprep.subr.mxu0 0.0
        %434 = vmatpush2.msra.mxu0 0.0
        %435 = vmatprep.subr.mxu0 0.0
        %436 = vmatpush2.msra.mxu0 0.0
        %437 = vmatprep.subr.mxu0 0.0
        %438 = vmatpush2.msra.mxu0 0.0
        %439 = vmatprep.subr.mxu0 0.0
        %440 = vmatpush2.msra.mxu0 0.0
        %441 = vmatprep.subr.mxu0 0.0
        %442 = vmatpush2.msra.mxu0 0.0
        %443 = vmatprep.subr.mxu0 0.0
        %444 = vmatpush2.msra.mxu0 0.0
        %445 = vmatprep.subr.mxu0 0.0
        %446 = vmatpush2.msra.mxu0 0.0
        %447 = vmatprep.subr.mxu0 0.0
        %448 = vmatpush2.msra.mxu0 0.0
        %449 = vmatprep.subr.mxu0 0.0
        %450 = vmatpush2.msra.mxu0 0.0
        %451 = vmatprep.subr.mxu0 0.0
        %452 = vmatpush2.msra.mxu0 0.0
        %453 = vmatprep.subr.mxu0 0.0
        %454 = vmatpush2.msra.mxu0 0.0
        %455 = vmatprep.subr.mxu0 0.0
        %456 = vmatpush2.msra.mxu0 0.0
        %457 = vmatprep.subr.mxu0 0.0
        %458 = vmatpush2.msra.mxu0 0.0
        %459 = vmatprep.subr.mxu0 0.0
        %460 = vmatpush2.msra.mxu0 0.0
        %461 = vmatprep.mubr.f32.mxu0 0.0
        %462 = vmatmul.mubr.f32.gmra.mxu0 %v395
        %v463 = vpop.f32.mrf.mxu0
        %v464 = vadd.f32 %v392, %v463
        %v465 = vpop.f32.mrf.mxu0
        %466 = vdwg.mxu0
        %v467 = vmax.f32 %v464, 0.0
        %468 = vst [vmem:[%s244] sm:$0xff] %v467
        %s469 = sand.u32 %s159, 1
        %s470 = scalar_lea.sflag [#allocation3], %s469
        %s471 = sand.u32 %s159, 1
        %s472 = smul.addr %s471, 8
        %s473 = scalar_lea.vmem [#allocation2], %s472
        // Predicated region
        $region45: #{conv1dnet_forward.1} parent=43 // pred_check
          %p474 = pneg %p169
        $region46: #{conv1dnet_forward.1} parent=43 // pred_check_branch
          %476 = sbr.rel (%p474) target = $region48
        $region47: #{conv1dnet_forward.1} parent=43 // pred_region
          %s478 = ssub.s32 128, 128
          %479 = vsyncadd %s470, %s478
          %s480 = smul.addr %s20, 128
          %s481 = scalar_lea.hbm %s6, %s480
          %s483 = sshll.u32 %s473, 4
          %s484 = int_to_ptr.vmem [resolvable:$true] %s483
          %486 = dma.vmem_to_hbm [thread:$0]  %s484, 128, %s481, %s470
        $region48: #{conv1dnet_forward.1} parent=43 // pred_fallthru
          _
      $region44: #{conv1dnet_forward.1} parent=5 // pred_fallthru
        _
      %p487 = scmp.le.s32.totalorder 2, %s15
      // Predicated region
      $region49: #{conv1dnet_forward.1} parent=5 // pred_check
        %p488 = pneg %p487
      $region50: #{conv1dnet_forward.1} parent=5 // pred_check_branch
        %490 = sbr.rel (%p488) target = $region52
      $region51: #{conv1dnet_forward.1} parent=5 // pred_region
        %s491 = ssub.s32 %s15, 2
        // Predicated region
        $region53: #{conv1dnet_forward.1} parent=51 // pred_check
          %p492 = pneg %p175
        $region54: #{conv1dnet_forward.1} parent=51 // pred_check_branch
          %494 = sbr.rel (%p492) target = $region56
        $region55: #{conv1dnet_forward.1} parent=51 // pred_region
          %s495 = sand.u32 %s160, 1
          %s496 = scalar_lea.sflag [#allocation3], %s495
          %s497 = sand.u32 %s160, 1
          %s498 = smul.addr %s497, 8
          %s499 = scalar_lea.vmem [#allocation2], %s498
          %500 = dma.done %s496, 128
        $region56: #{conv1dnet_forward.1} parent=51 // pred_fallthru
          _
      $region52: #{conv1dnet_forward.1} parent=5 // pred_fallthru
        _
    $region6: #{conv1dnet_forward.1} parent=1 // loop_footer
      %s19 = sadd.s32 1, %s15
    $region7: #{conv1dnet_forward.1} parent=1 // loop_footer_branch
      %14 = sbr.rel target = $region3
    $region8: #{conv1dnet_forward.1} parent=1 // loop_exit
      _
    %501 = vsyncpa [#allocation3], 1
    %s502 = scalar_lea.sflag [#allocation3], 1
    %503 = vsyncpa %s502, 1

</llo_original>
